<compile_context>
chip_gen: v7x
topology: tpu7x:2x2x1
jax: 0.10.0
libtpu: 0.0.40
codegen_flags: <defaults>
</compile_context>

<pallas_src>
import jax
import jax.numpy as jnp
from jax import lax
from jax.experimental import pallas as pl
from jax.experimental.pallas import tpu as pltpu

BN_EPS = 1e-5


def _round_up(x, m):
    return (x + m - 1) // m * m


# --------------------------------------------------------------------------
# Pass 1: conv as tiled im2col matmul + per-tile channel stats
#   refs: patches (tm, tk) | weights (tk, tn) || y (tm, tn) | s1 (8, tn) |
#         s2 (8, tn) || acc scratch (tm, tn) f32
# --------------------------------------------------------------------------
def conv_stats_kernel(p_ref, w_ref, y_ref, s1_ref, s2_ref, acc_ref):
    k = pl.program_id(2)

    @pl.when(k == 0)
    def _():
        acc_ref[...] = jnp.zeros_like(acc_ref)

    acc_ref[...] += jnp.dot(
        p_ref[...], w_ref[...], preferred_element_type=jnp.float32
    )

    @pl.when(k == pl.num_programs(2) - 1)
    def _():
        y = acc_ref[...]
        y_ref[...] = y
        # Per-(M-tile, channel) partial sums for the two-pass BN. Replicated
        # across 8 sublanes so the stats output block stays (8, 128)-tiled.
        s1 = jnp.sum(y, axis=0, keepdims=True)          # (1, tn)
        s2 = jnp.sum(y * y, axis=0, keepdims=True)      # (1, tn)
        s1_ref[...] = jnp.broadcast_to(s1, s1_ref.shape)
        s2_ref[...] = jnp.broadcast_to(s2, s2_ref.shape)


# --------------------------------------------------------------------------
# Pass 2: BatchNorm (training-mode batch stats) + affine + ReLU
#   refs: y (tm, tn) | mean (1, tn) | E[y^2] (1, tn) | gamma (1, tn) |
#         beta (1, tn) || out (tm, tn)
# --------------------------------------------------------------------------
def bn_relu_kernel(y_ref, mean_ref, ex2_ref, gamma_ref, beta_ref, o_ref):
    mean = mean_ref[...]
    var = jnp.maximum(ex2_ref[...] - mean * mean, 0.0)
    # rsqrt runs on the EUP slot -> effectively free in-kernel.
    scale = gamma_ref[...] * lax.rsqrt(var + BN_EPS)
    shift = beta_ref[...] - mean * scale
    o_ref[...] = jnp.maximum(y_ref[...] * scale + shift, 0.0)


# --------------------------------------------------------------------------
# Wrapper: PyTorch-style NCHW / OIHW in, NCHW out.
# --------------------------------------------------------------------------
def conv_bn_relu(x, w, b, gamma, beta, *, ks=3, stride=1, padding=1,
                 dilation=1, tm=512, tn=128, tk=128):
    """x: (N,Cin,H,W) f32; w: (Cout,Cin,ks,ks); b/gamma/beta: (Cout,)."""
    del b  # Conv bias is mathematically cancelled by training-mode BN
    #        mean-subtraction, so it never affects the forward output.

    N, C, H, W = x.shape
    Cout = w.shape[0]
    Ho = (H + 2 * padding - dilation * (ks - 1) - 1) // stride + 1
    Wo = (W + 2 * padding - dilation * (ks - 1) - 1) // stride + 1

    # ---- glue: im2col (pure layout work in XLA) ----
    xp = jnp.pad(x, ((0, 0), (0, 0), (padding, padding), (padding, padding)))
    taps = []
    for kh in range(ks):
        for kw in range(ks):
            h0, w0 = kh * dilation, kw * dilation
            taps.append(
                xp[:, :, h0:h0 + stride * Ho:stride, w0:w0 + stride * Wo:stride]
            )
    p = jnp.stack(taps, axis=0).reshape(ks, ks, N, C, Ho, Wo)
    p = jnp.transpose(p, (2, 4, 5, 3, 0, 1)).reshape(N * Ho * Wo, C * ks * ks)
    wmat = jnp.transpose(w, (1, 2, 3, 0)).reshape(C * ks * ks, Cout)

    M, K = p.shape
    Mp = _round_up(M, tm)          # zero rows: contribute 0 to sums, sliced off
    Kp = _round_up(max(K, 128), tk)
    Cp = _round_up(max(Cout, 128), tn)   # lane-dense output / full MXU width

    p = jnp.pad(p.astype(jnp.float32), ((0, Mp - M), (0, Kp - K)))
    wmat = jnp.pad(wmat.astype(jnp.float32), ((0, Kp - K), (0, Cp - Cout)))

    gm, gn, gk = Mp // tm, Cp // tn, Kp // tk

    # ------------------ pass 1: conv matmul + partial BN stats --------------
    y_pad, s1, s2 = pl.pallas_call(
        conv_stats_kernel,
        out_shape=(
            jax.ShapeDtypeStruct((Mp, Cp), jnp.float32),
            jax.ShapeDtypeStruct((gm * 8, Cp), jnp.float32),
            jax.ShapeDtypeStruct((gm * 8, Cp), jnp.float32),
        ),
        grid_spec=pltpu.PrefetchScalarGridSpec(
            num_scalar_prefetch=0,
            grid=(gm, gn, gk),
            in_specs=[
                # Largest stream; if xprof shows exposed DMA add
                # pipeline_mode=pl.Buffered(3).
                pl.BlockSpec((tm, tk), lambda m, n, k: (m, k)),
                pl.BlockSpec((tk, tn), lambda m, n, k: (k, n)),
            ],
            out_specs=(
                pl.BlockSpec((tm, tn), lambda m, n, k: (m, n)),
                pl.BlockSpec((8, tn), lambda m, n, k: (m, n)),
                pl.BlockSpec((8, tn), lambda m, n, k: (m, n)),
            ),
            scratch_shapes=[pltpu.VMEM((tm, tn), jnp.float32)],
        ),
        compiler_params=pltpu.CompilerParams(
            dimension_semantics=("parallel", "parallel", "arbitrary"),
            vmem_limit_bytes=32 * 1024 * 1024,
        ),
    )(p, wmat)

    # ------------------ tiny global-stat finalize (gm x Cp) -----------------
    s1 = s1.reshape(gm, 8, Cp)[:, 0, :]
    s2 = s2.reshape(gm, 8, Cp)[:, 0, :]
    mean = (jnp.sum(s1, axis=0) / M).reshape(1, Cp)
    ex2 = (jnp.sum(s2, axis=0) / M).reshape(1, Cp)

    gamma_p = jnp.pad(gamma.astype(jnp.float32), (0, Cp - Cout)).reshape(1, Cp)
    beta_p = jnp.pad(beta.astype(jnp.float32), (0, Cp - Cout)).reshape(1, Cp)

    # ------------------ pass 2: normalize + affine + ReLU -------------------
    out_pad = pl.pallas_call(
        bn_relu_kernel,
        out_shape=jax.ShapeDtypeStruct((Mp, Cp), jnp.float32),
        grid_spec=pltpu.PrefetchScalarGridSpec(
            num_scalar_prefetch=0,
            grid=(gm, gn),
            in_specs=[
                pl.BlockSpec((tm, tn), lambda m, n: (m, n)),
                pl.BlockSpec((1, tn), lambda m, n: (0, n)),
                pl.BlockSpec((1, tn), lambda m, n: (0, n)),
                pl.BlockSpec((1, tn), lambda m, n: (0, n)),
                pl.BlockSpec((1, tn), lambda m, n: (0, n)),
            ],
            out_specs=pl.BlockSpec((tm, tn), lambda m, n: (m, n)),
        ),
        compiler_params=pltpu.CompilerParams(
            dimension_semantics=("parallel", "parallel"),
            vmem_limit_bytes=32 * 1024 * 1024,
        ),
    )(y_pad, mean, ex2, gamma_p, beta_p)

    # slice off M / channel padding, back to NCHW
    out2d = out_pad[:M, :Cout]
    return jnp.transpose(out2d.reshape(N, Ho, Wo, Cout), (0, 3, 1, 2))


def reference(x, w, b, gamma, beta):
    y = lax.conv_general_dilated(
        x, w, window_strides=(1, 1), padding=((1, 1), (1, 1)),
        dimension_numbers=("NCHW", "OIHW", "NCHW"),
    ) + b.reshape(1, -1, 1, 1)
    mean = jnp.mean(y, axis=(0, 2, 3), keepdims=True)
    var = jnp.mean((y - mean) ** 2, axis=(0, 2, 3), keepdims=True)
    y = (y - mean) / jnp.sqrt(var + BN_EPS)
    y = y * gamma.reshape(1, -1, 1, 1) + beta.reshape(1, -1, 1, 1)
    return jnp.maximum(y, 0.0)


if __name__ == "__main__":
    key = jax.random.PRNGKey(0)
    N, Cin, H, W = 2, 4, 16, 16
    Cout, ks = 8, 3

    k_x, k_w = jax.random.split(key)
    x = jax.random.normal(k_x, (N, Cin, H, W), dtype=jnp.float32)

    # Parameter init matching the PyTorch module's init_weight():
    #  - Conv2d weight: kaiming_normal_(a=1) => std = sqrt(1/fan_in)
    #  - Conv2d bias:   0
    #  - BatchNorm2d:   weight=1, bias=0
    fan_in = Cin * ks * ks
    w = jax.random.normal(k_w, (Cout, Cin, ks, ks), dtype=jnp.float32) * (1.0 / fan_in) ** 0.5
    b = jnp.zeros((Cout,), dtype=jnp.float32)
    gamma = jnp.ones((Cout,), dtype=jnp.float32)
    beta = jnp.zeros((Cout,), dtype=jnp.float32)
    # TODO(synk): BN running_mean/running_var momentum updates are a training
    # side effect not part of the returned tensor; not materialized here.

    # Small tiles here so the toy shapes exercise the multi-tile grid path and
    # cross-tile BN-stat accumulation; for real layers use the defaults
    # (tm=512, tn=128; tn=tk=256 on v6e/v7x).
    out = jax.block_until_ready(
        conv_bn_relu(x, w, b, gamma, beta, tm=128, tn=128, tk=128)
    )
    ref = reference(x, w, b, gamma, beta)
    assert out.shape == (N, Cout, H, W)
    assert jnp.allclose(out, ref, atol=1e-4, rtol=1e-4), float(
        jnp.max(jnp.abs(out - ref))
    )
    print("KERNEL_OK")
</pallas_src>

<mosaic_0001>
module attributes {stable_mosaic.version = 11 : i64} {
  func.func @conv_stats_kernel(%arg0: i32, %arg1: i32, %arg2: i32, %arg3: memref<128x128xf32, #tpu.memory_space<vmem>>, %arg4: memref<128x128xf32, #tpu.memory_space<vmem>>, %arg5: memref<128x128xf32, #tpu.memory_space<vmem>>, %arg6: memref<8x128xf32, #tpu.memory_space<vmem>>, %arg7: memref<8x128xf32, #tpu.memory_space<vmem>>, %arg8: memref<128x128xf32, #tpu.memory_space<vmem>>) attributes {dimension_semantics = [#tpu.dimension_semantics<parallel>, #tpu.dimension_semantics<parallel>, #tpu.dimension_semantics<arbitrary>], iteration_bounds = array<i64: 4, 1, 1>, scalar_prefetch = 0 : i64, scratch_operands = 1 : i64, tpu.core_type = #tpu.core_type<tc>, window_params = [{transform_indices = @transform_0, window_bounds = array<i64: 128, 128>}, {transform_indices = @transform_1, window_bounds = array<i64: 128, 128>}, {transform_indices = @transform_2, window_bounds = array<i64: 128, 128>}, {transform_indices = @transform_3, window_bounds = array<i64: 8, 128>}, {transform_indices = @transform_4, window_bounds = array<i64: 8, 128>}]} {
    %c0_i32 = arith.constant 0 : i32
    %0 = arith.cmpi eq, %arg2, %c0_i32 : i32
    %1 = arith.extui %0 : i1 to i32
    %c0_i32_0 = arith.constant 0 : i32
    %2 = arith.cmpi ne, %1, %c0_i32_0 : i32
    scf.if %2 {
      %cst_10 = arith.constant 0.000000e+00 : f32
      %12 = vector.broadcast %cst_10 : f32 to vector<128x128xf32>
      %c0_11 = arith.constant 0 : index
      %c0_12 = arith.constant 0 : index
      %13 = vector.load %arg8[%c0_11, %c0_12] : memref<128x128xf32, #tpu.memory_space<vmem>>, vector<128x128xf32>
      tpu.vector_store %arg8[%c0_11, %c0_12], %12 {strides = array<i32>} : memref<128x128xf32, #tpu.memory_space<vmem>>, vector<128x128xf32>,
    } else {
    }
    %c0 = arith.constant 0 : index
    %c0_1 = arith.constant 0 : index
    %3 = vector.load %arg8[%c0, %c0_1] : memref<128x128xf32, #tpu.memory_space<vmem>>, vector<128x128xf32>
    %c0_2 = arith.constant 0 : index
    %c0_3 = arith.constant 0 : index
    %4 = vector.load %arg3[%c0_2, %c0_3] : memref<128x128xf32, #tpu.memory_space<vmem>>, vector<128x128xf32>
    %c0_4 = arith.constant 0 : index
    %c0_5 = arith.constant 0 : index
    %5 = vector.load %arg4[%c0_4, %c0_5] : memref<128x128xf32, #tpu.memory_space<vmem>>, vector<128x128xf32>
    %cst = arith.constant dense<0.000000e+00> : vector<128x128xf32>
    %6 = tpu.matmul %4, %5, %cst {dimension_numbers = #tpu.dot_dimension_numbers<[1], [0], [0], [1], [0, 0, 1, 1], [], []>} : vector<128x128xf32>, vector<128x128xf32>, vector<128x128xf32> -> vector<128x128xf32>
    %7 = arith.addf %3, %6 : vector<128x128xf32>
    %c0_6 = arith.constant 0 : index
    %c0_7 = arith.constant 0 : index
    %8 = vector.load %arg8[%c0_6, %c0_7] : memref<128x128xf32, #tpu.memory_space<vmem>>, vector<128x128xf32>
    tpu.vector_store %arg8[%c0_6, %c0_7], %7 {strides = array<i32>} : memref<128x128xf32, #tpu.memory_space<vmem>>, vector<128x128xf32>,
    %c0_i32_8 = arith.constant 0 : i32
    %9 = arith.cmpi eq, %arg2, %c0_i32_8 : i32
    %10 = arith.extui %9 : i1 to i32
    %c0_i32_9 = arith.constant 0 : i32
    %11 = arith.cmpi ne, %10, %c0_i32_9 : i32
    scf.if %11 {
      %c0_10 = arith.constant 0 : index
      %c0_11 = arith.constant 0 : index
      %12 = vector.load %arg8[%c0_10, %c0_11] : memref<128x128xf32, #tpu.memory_space<vmem>>, vector<128x128xf32>
      %c0_12 = arith.constant 0 : index
      %c0_13 = arith.constant 0 : index
      %13 = vector.load %arg5[%c0_12, %c0_13] : memref<128x128xf32, #tpu.memory_space<vmem>>, vector<128x128xf32>
      tpu.vector_store %arg5[%c0_12, %c0_13], %12 {strides = array<i32>} : memref<128x128xf32, #tpu.memory_space<vmem>>, vector<128x128xf32>,
      %cst_14 = arith.constant dense<0.000000e+00> : vector<128xf32>
      %14 = vector.multi_reduction <add>, %12, %cst_14 [0] : vector<128x128xf32> to vector<128xf32>
      %15 = vector.shape_cast %14 : vector<128xf32> to vector<1x128xf32>
      %16 = arith.mulf %12, %12 : vector<128x128xf32>
      %cst_15 = arith.constant dense<0.000000e+00> : vector<128xf32>
      %17 = vector.multi_reduction <add>, %16, %cst_15 [0] : vector<128x128xf32> to vector<128xf32>
      %18 = vector.shape_cast %17 : vector<128xf32> to vector<1x128xf32>
      %19 = vector.shape_cast %15 : vector<1x128xf32> to vector<1x128xf32>
      %20 = vector.broadcast %19 : vector<1x128xf32> to vector<8x128xf32>
      %c0_16 = arith.constant 0 : index
      %c0_17 = arith.constant 0 : index
      %21 = vector.load %arg6[%c0_16, %c0_17] : memref<8x128xf32, #tpu.memory_space<vmem>>, vector<8x128xf32>
      tpu.vector_store %arg6[%c0_16, %c0_17], %20 {strides = array<i32>} : memref<8x128xf32, #tpu.memory_space<vmem>>, vector<8x128xf32>,
      %22 = vector.shape_cast %18 : vector<1x128xf32> to vector<1x128xf32>
      %23 = vector.broadcast %22 : vector<1x128xf32> to vector<8x128xf32>
      %c0_18 = arith.constant 0 : index
      %c0_19 = arith.constant 0 : index
      %24 = vector.load %arg7[%c0_18, %c0_19] : memref<8x128xf32, #tpu.memory_space<vmem>>, vector<8x128xf32>
      tpu.vector_store %arg7[%c0_18, %c0_19], %23 {strides = array<i32>} : memref<8x128xf32, #tpu.memory_space<vmem>>, vector<8x128xf32>,
    } else {
    }
    return
  }
  func.func @transform_0(%arg0: i32, %arg1: i32, %arg2: i32) -> (i32, i32) {
    %c0_i32 = arith.constant 0 : i32
    return %arg0, %arg2 : i32, i32
  }
  func.func @transform_1(%arg0: i32, %arg1: i32, %arg2: i32) -> (i32, i32) {
    %c0_i32 = arith.constant 0 : i32
    return %arg2, %arg1 : i32, i32
  }
  func.func @transform_2(%arg0: i32, %arg1: i32, %arg2: i32) -> (i32, i32) {
    %c0_i32 = arith.constant 0 : i32
    return %arg0, %arg1 : i32, i32
  }
  func.func @transform_3(%arg0: i32, %arg1: i32, %arg2: i32) -> (i32, i32) {
    %c0_i32 = arith.constant 0 : i32
    return %arg0, %arg1 : i32, i32
  }
  func.func @transform_4(%arg0: i32, %arg1: i32, %arg2: i32) -> (i32, i32) {
    %c0_i32 = arith.constant 0 : i32
    return %arg0, %arg1 : i32, i32
  }
}

</mosaic_0001>

<llo_original>
// kernel: tpu_custom_call.1
$region0: #{tpu_custom_call.1}
  #allocation0 [shape = 'u32[]', space=smem, size = 0x4, offset = 0x4, fixed_abs, tag = 'smem constant byte address 0x4 - core index']
  #allocation1 [shape = 'u32[144,128]{1,0:T(1,128)}', space=vmem, size = 0x12000, scoped, tag = 'internal scratch']
  #allocation2 [shape = 'f32[128,128]{1,0:T(8,128)}', space=vmem, size = 0x10000, scoped, tag = 'scratch operand']
  %s0 = inlined_call_operand.hbm [shape: f32[512,128], index: 0, kind: input, shape index: {}]
  %s1 = inlined_call_operand.hbm [shape: f32[128,128], index: 1, kind: input, shape index: {}]
  %s2 = inlined_call_operand.hbm [shape: f32[512,128], index: 2, kind: output, shape index: {0}]
  %s3 = inlined_call_operand.hbm [shape: f32[32,128], index: 3, kind: output, shape index: {1}]
  %s4 = inlined_call_operand.hbm [shape: f32[32,128], index: 4, kind: output, shape index: {2}]
  %5 = xla_tuple %s2, %s3, %s4
  %s6 = sld [smem:[#allocation0]]
  $region73: #{tpu_custom_call.1} parent=0
    _
  %s8 = ssub.s32 1, %s6
  %s9 = scalar_select 0, %s8, %s6
  $region1: #{tpu_custom_call.1} parent=0
    #allocation3 [shape = 'u8[131072]{0}', space=vmem, size = 0x20000, scoped, tag = 'input window, operand 0']
    #allocation4 [shape = 's32[2]{0}', space=sflag, size = 0x8, scoped, tag = 'scoped memory for tpu_custom_call.1']
    #allocation5 [shape = 's32[2]{0}', space=sflag, size = 0x8, scoped, tag = 'scoped memory for tpu_custom_call.1']
    #allocation6 [shape = 'u8[65536]{0}', space=vmem, size = 0x10000, scoped, tag = 'input window, operand 1, single buffered']
    #allocation7 [shape = 's32[1]{0}', space=sflag, size = 0x4, scoped, tag = 'scoped memory for tpu_custom_call.1']
    #allocation8 [shape = 'u8[131072]{0}', space=vmem, size = 0x20000, scoped, tag = 'output window, operand 0']
    #allocation9 [shape = 'u8[8192]{0}', space=vmem, size = 0x2000, scoped, tag = 'output window, operand 1']
    #allocation10 [shape = 's32[2]{0}', space=sflag, size = 0x8, scoped, tag = 'scoped memory for tpu_custom_call.1']
    #allocation11 [shape = 'u8[8192]{0}', space=vmem, size = 0x2000, scoped, tag = 'output window, operand 2']
    %10 = vsyncpa [#allocation4], 0
    %s11 = scalar_lea.sflag [#allocation4], 1
    %12 = vsyncpa %s11, 0
    %13 = vsyncpa [#allocation7], 0
    %14 = vsyncpa [#allocation5], 0
    %s15 = scalar_lea.sflag [#allocation5], 1
    %16 = vsyncpa %s15, 0
    %17 = vsyncpa [#allocation10], 0
    %s18 = scalar_lea.sflag [#allocation10], 1
    %19 = vsyncpa %s18, 0
    loop: start=0, step=1, limit=6
    $region2: #{tpu_custom_call.1} parent=1 // loop_pre_header
      _
    $region3: #{tpu_custom_call.1} parent=1 // loop_header
      %s21 = sphi 0, %s25
      %p22 = scmp.ge.s32.totalorder %s21, 6
      %s28 = sphi 0, %s47
      %s29 = sphi 0, %s43
      %s30 = sphi 0, %s39
      %s31 = sphi 0, %s28
      %s32 = sphi 0, %s29
      %s33 = sphi 0, %s30
      %s34 = sphi 0, %s31
      %s35 = sphi 0, %s32
      %s36 = sphi 0, %s33
      %s52 = sphi 0, %s54
      %s55 = sphi 0, %s52
      %s56 = sphi 0, %s55
      %s72 = sphi 0, %s56
      %s80 = sphi 0, %s82
      %s83 = sphi 0, %s80
      %s84 = sphi 0, %s83
      %s100 = sphi 0, %s84
      %s108 = sphi 0, %s110
      %s111 = sphi 0, %s108
      %s112 = sphi 0, %s111
      %s128 = sphi 0, %s112
      %s136 = sphi 0, %s138
      %s139 = sphi 0, %s136
      %s140 = sphi 0, %s139
      %s156 = sphi 0, %s140
      %s164 = sphi 0, %s166
      %s167 = sphi 0, %s164
      %s168 = sphi 0, %s167
      %s184 = sphi 0, %s168
    $region4: #{tpu_custom_call.1} parent=1 // loop_header_branch
      %24 = sbr.rel (%p22) target = $region8
    $region5: #{tpu_custom_call.1} parent=1 // loop_body
      %s26 = ssub.s32 %s21, 1
      %s27 = ssub.s32 %s21, 2
      %s37 = sadd.s32 1, %s30
      %p38 = scmp.ge.s32.totalorder %s37, 1
      %s39 = scalar_select %p38, 0, %s37
      %s40 = sadd.s32 1, %s29
      %s41 = scalar_select %p38, %s40, %s29
      %p42 = scmp.ge.s32.totalorder %s41, 1
      %s43 = scalar_select %p42, 0, %s41
      %s44 = sadd.s32 1, %s28
      %s45 = scalar_select %p42, %s44, %s28
      %p46 = scmp.ge.s32.totalorder %s45, 4
      %s47 = scalar_select %p46, 0, %s45
      %s48 = ssub.s32 %s28, %s47
      %s49 = ssub.s32 %s30, %s39
      %s50 = sor.u32 %s48, %s49
      %p51 = scmp.eq.s32.totalorder %s50, 0
      %s53 = sadd.s32 %s52, 1
      %s54 = scalar_select %p51, %s52, %s53
      %p57 = pneg %p51
      %p58 = scmp.eq.s32.totalorder %s21, 3
      %p59 = por %p57, %p58
      %p60 = scmp.ne.s32.totalorder %s52, %s55
      %p61 = scmp.eq.s32.totalorder %s21, 0
      %p62 = por %p60, %p61
      %p63 = scmp.ne.s32.totalorder %s52, %s55
      %p64 = scmp.eq.s32.totalorder %s26, 3
      %p65 = por %p63, %p64
      %p66 = scmp.ne.s32.totalorder %s55, %s56
      %p67 = scmp.eq.s32.totalorder %s26, 0
      %p68 = por %p66, %p67
      %p69 = scmp.ne.s32.totalorder %s55, %s56
      %p70 = scmp.eq.s32.totalorder %s27, 3
      %p71 = por %p69, %p70
      %p73 = scmp.ne.s32.totalorder %s56, %s72
      %p74 = scmp.eq.s32.totalorder %s27, 0
      %p75 = por %p73, %p74
      %s76 = ssub.s32 %s30, %s39
      %s77 = ssub.s32 %s29, %s43
      %s78 = sor.u32 %s76, %s77
      %p79 = scmp.eq.s32.totalorder %s78, 0
      %s81 = sadd.s32 %s80, 1
      %s82 = scalar_select %p79, %s80, %s81
      %p85 = pneg %p79
      %p86 = scmp.eq.s32.totalorder %s21, 3
      %p87 = por %p85, %p86
      %p88 = scmp.ne.s32.totalorder %s80, %s83
      %p89 = scmp.eq.s32.totalorder %s21, 0
      %p90 = por %p88, %p89
      %p91 = scmp.ne.s32.totalorder %s80, %s83
      %p92 = scmp.eq.s32.totalorder %s26, 3
      %p93 = por %p91, %p92
      %p94 = scmp.ne.s32.totalorder %s83, %s84
      %p95 = scmp.eq.s32.totalorder %s26, 0
      %p96 = por %p94, %p95
      %p97 = scmp.ne.s32.totalorder %s83, %s84
      %p98 = scmp.eq.s32.totalorder %s27, 3
      %p99 = por %p97, %p98
      %p101 = scmp.ne.s32.totalorder %s84, %s100
      %p102 = scmp.eq.s32.totalorder %s27, 0
      %p103 = por %p101, %p102
      %s104 = ssub.s32 %s28, %s47
      %s105 = ssub.s32 %s29, %s43
      %s106 = sor.u32 %s104, %s105
      %p107 = scmp.eq.s32.totalorder %s106, 0
      %s109 = sadd.s32 %s108, 1
      %s110 = scalar_select %p107, %s108, %s109
      %p113 = pneg %p107
      %p114 = scmp.eq.s32.totalorder %s21, 3
      %p115 = por %p113, %p114
      %p116 = scmp.ne.s32.totalorder %s108, %s111
      %p117 = scmp.eq.s32.totalorder %s21, 0
      %p118 = por %p116, %p117
      %p119 = scmp.ne.s32.totalorder %s108, %s111
      %p120 = scmp.eq.s32.totalorder %s26, 3
      %p121 = por %p119, %p120
      %p122 = scmp.ne.s32.totalorder %s111, %s112
      %p123 = scmp.eq.s32.totalorder %s26, 0
      %p124 = por %p122, %p123
      %p125 = scmp.ne.s32.totalorder %s111, %s112
      %p126 = scmp.eq.s32.totalorder %s27, 3
      %p127 = por %p125, %p126
      %p129 = scmp.ne.s32.totalorder %s112, %s128
      %p130 = scmp.eq.s32.totalorder %s27, 0
      %p131 = por %p129, %p130
      %s132 = ssub.s32 %s28, %s47
      %s133 = ssub.s32 %s29, %s43
      %s134 = sor.u32 %s132, %s133
      %p135 = scmp.eq.s32.totalorder %s134, 0
      %s137 = sadd.s32 %s136, 1
      %s138 = scalar_select %p135, %s136, %s137
      %p141 = pneg %p135
      %p142 = scmp.eq.s32.totalorder %s21, 3
      %p143 = por %p141, %p142
      %p144 = scmp.ne.s32.totalorder %s136, %s139
      %p145 = scmp.eq.s32.totalorder %s21, 0
      %p146 = por %p144, %p145
      %p147 = scmp.ne.s32.totalorder %s136, %s139
      %p148 = scmp.eq.s32.totalorder %s26, 3
      %p149 = por %p147, %p148
      %p150 = scmp.ne.s32.totalorder %s139, %s140
      %p151 = scmp.eq.s32.totalorder %s26, 0
      %p152 = por %p150, %p151
      %p153 = scmp.ne.s32.totalorder %s139, %s140
      %p154 = scmp.eq.s32.totalorder %s27, 3
      %p155 = por %p153, %p154
      %p157 = scmp.ne.s32.totalorder %s140, %s156
      %p158 = scmp.eq.s32.totalorder %s27, 0
      %p159 = por %p157, %p158
      %s160 = ssub.s32 %s28, %s47
      %s161 = ssub.s32 %s29, %s43
      %s162 = sor.u32 %s160, %s161
      %p163 = scmp.eq.s32.totalorder %s162, 0
      %s165 = sadd.s32 %s164, 1
      %s166 = scalar_select %p163, %s164, %s165
      %p169 = pneg %p163
      %p170 = scmp.eq.s32.totalorder %s21, 3
      %p171 = por %p169, %p170
      %p172 = scmp.ne.s32.totalorder %s164, %s167
      %p173 = scmp.eq.s32.totalorder %s21, 0
      %p174 = por %p172, %p173
      %p175 = scmp.ne.s32.totalorder %s164, %s167
      %p176 = scmp.eq.s32.totalorder %s26, 3
      %p177 = por %p175, %p176
      %p178 = scmp.ne.s32.totalorder %s167, %s168
      %p179 = scmp.eq.s32.totalorder %s26, 0
      %p180 = por %p178, %p179
      %p181 = scmp.ne.s32.totalorder %s167, %s168
      %p182 = scmp.eq.s32.totalorder %s27, 3
      %p183 = por %p181, %p182
      %p185 = scmp.ne.s32.totalorder %s168, %s184
      %p186 = scmp.eq.s32.totalorder %s27, 0
      %p187 = por %p185, %p186
      %p188 = scmp.le.s32.totalorder 1, %s21
      %p189 = scmp.lt.s32.totalorder %s21, 5
      %p190 = pnand %p188, %p189
      %p191 = pneg %p190
      // Predicated region
      $region9: #{tpu_custom_call.1} parent=5 // pred_check
        _
      $region10: #{tpu_custom_call.1} parent=5 // pred_check_branch
        %193 = sbr.rel (%p190) target = $region12
      $region11: #{tpu_custom_call.1} parent=5 // pred_region
        %s194 = ssub.s32 %s21, 1
        // Predicated region
        $region13: #{tpu_custom_call.1} parent=11 // pred_check
          %p195 = pneg %p96
        $region14: #{tpu_custom_call.1} parent=11 // pred_check_branch
          %197 = sbr.rel (%p195) target = $region16
        $region15: #{tpu_custom_call.1} parent=11 // pred_region
          %s198 = smul.u32 16, %s33
          %s200 = ssub.s32 2048, 2048
          %201 = vsyncadd [#allocation7], %s200
          %s202 = sadd.s32 %s32, %s198
          %s203 = smul.addr %s202, 128
          %s204 = scalar_lea.hbm %s1, %s203
          %s205 = sshll.u32 [#allocation6], 4
          %s206 = int_to_ptr.vmem [resolvable:$true] %s205
          %211 = dma.hbm_to_vmem [thread:$0]  %s204, 2048, %s206, [#allocation7], 128, 128, 8
        $region16: #{tpu_custom_call.1} parent=11 // pred_fallthru
          _
      $region12: #{tpu_custom_call.1} parent=5 // pred_fallthru
        _
      %p212 = scmp.lt.s32.totalorder %s21, 4
      // Predicated region
      $region17: #{tpu_custom_call.1} parent=5 // pred_check
        %p213 = pneg %p212
      $region18: #{tpu_custom_call.1} parent=5 // pred_check_branch
        %215 = sbr.rel (%p213) target = $region20
      $region19: #{tpu_custom_call.1} parent=5 // pred_region
        // Predicated region
        $region21: #{tpu_custom_call.1} parent=19 // pred_check
          %p216 = pneg %p62
        $region22: #{tpu_custom_call.1} parent=19 // pred_check_branch
          %218 = sbr.rel (%p216) target = $region24
        $region23: #{tpu_custom_call.1} parent=19 // pred_region
          %s219 = sand.u32 %s52, 1
          %s220 = scalar_lea.sflag [#allocation4], %s219
          %s221 = sand.u32 %s52, 1
          %s222 = smul.addr %s221, 128
          %s223 = scalar_lea.vmem [#allocation3], %s222
          %s224 = smul.u32 16, %s28
          %s226 = ssub.s32 2048, 2048
          %227 = vsyncadd %s220, %s226
          %s228 = sadd.s32 %s30, %s224
          %s229 = smul.addr %s228, 128
          %s230 = scalar_lea.hbm %s0, %s229
          %s231 = sshll.u32 %s223, 4
          %s232 = int_to_ptr.vmem [resolvable:$true] %s231
          %237 = dma.hbm_to_vmem [thread:$0]  %s230, 2048, %s232, %s220, 128, 128, 8
        $region24: #{tpu_custom_call.1} parent=19 // pred_fallthru
          _
      $region20: #{tpu_custom_call.1} parent=5 // pred_fallthru
        _
      %p238 = scmp.le.s32.totalorder 1, %s21
      %p239 = scmp.lt.s32.totalorder %s21, 5
      %p240 = pnand %p238, %p239
      %p241 = pneg %p240
      // Predicated region
      $region25: #{tpu_custom_call.1} parent=5 // pred_check
        _
      $region26: #{tpu_custom_call.1} parent=5 // pred_check_branch
        %243 = sbr.rel (%p240) target = $region28
      $region27: #{tpu_custom_call.1} parent=5 // pred_region
        %s244 = ssub.s32 %s21, 1
        %s245 = sand.u32 %s55, 1
        %s246 = scalar_lea.sflag [#allocation4], %s245
        %s247 = sand.u32 %s55, 1
        %s248 = smul.addr %s247, 128
        %s249 = scalar_lea.vmem [#allocation3], %s248
        // Predicated region
        $region29: #{tpu_custom_call.1} parent=27 // pred_check
          %p250 = pneg %p68
        $region30: #{tpu_custom_call.1} parent=27 // pred_check_branch
          %252 = sbr.rel (%p250) target = $region32
        $region31: #{tpu_custom_call.1} parent=27 // pred_region
          %253 = dma.done %s246, 2048
        $region32: #{tpu_custom_call.1} parent=27 // pred_fallthru
          _
        // Predicated region
        $region33: #{tpu_custom_call.1} parent=27 // pred_check
          %p254 = pneg %p96
        $region34: #{tpu_custom_call.1} parent=27 // pred_check_branch
          %256 = sbr.rel (%p254) target = $region36
        $region35: #{tpu_custom_call.1} parent=27 // pred_region
          %257 = dma.done [#allocation7], 2048
        $region36: #{tpu_custom_call.1} parent=27 // pred_fallthru
          _
        %s258 = sand.u32 %s55, 1
        %s259 = scalar_lea.sflag [#allocation4], %s258
        %s260 = sand.u32 %s55, 1
        %s261 = smul.addr %s260, 128
        %s262 = scalar_lea.vmem [#allocation3], %s261
        %p263 = pneg %p68
        %p264 = pneg %p65
        %p265 = pneg %p96
        %p266 = pneg %p93
        %p267 = pneg %p124
        %p268 = pneg %p121
        %s269 = sand.u32 %s111, 1
        %s270 = scalar_lea.sflag [#allocation5], %s269
        %s271 = sand.u32 %s111, 1
        %s272 = smul.addr %s271, 128
        %s273 = scalar_lea.vmem [#allocation8], %s272
        %p274 = pneg %p152
        %p275 = pneg %p149
        %s276 = sand.u32 %s26, 1
        %s277 = scalar_lea.sflag [#allocation10], %s276
        %s278 = sand.u32 %s139, 1
        %s279 = smul.addr %s278, 8
        %s280 = scalar_lea.vmem [#allocation9], %s279
        %p281 = pneg %p180
        %p282 = pneg %p177
        %s283 = sand.u32 %s26, 1
        %s284 = scalar_lea.sflag [#allocation10], %s283
        %s285 = sand.u32 %s167, 1
        %s286 = smul.addr %s285, 8
        %s287 = scalar_lea.vmem [#allocation11], %s286
        %s288 = smul.u32 16, %s31
        %s289 = smul.u32 16, %s33
        %s290 = smul.u32 16, %s31
        %p291 = scmp.eq.s32.totalorder %s33, 0
        // Predicated region
        $region37: #{tpu_custom_call.1} parent=27 // pred_check
          %p292 = pneg %p291
        $region38: #{tpu_custom_call.1} parent=27 // pred_check_branch
          %294 = sbr.rel (%p292) target = $region40
        $region39: #{tpu_custom_call.1} parent=27 // pred_region
          %295 = vst [vmem:[#allocation2] sm:$0xff] 0.0
          %296 = vst [vmem:[#allocation2 + $0x8] sm:$0xff] 0.0
          %297 = vst [vmem:[#allocation2 + $0x10] sm:$0xff] 0.0
          %298 = vst [vmem:[#allocation2 + $0x18] sm:$0xff] 0.0
          %299 = vst [vmem:[#allocation2 + $0x20] sm:$0xff] 0.0
          %300 = vst [vmem:[#allocation2 + $0x28] sm:$0xff] 0.0
          %301 = vst [vmem:[#allocation2 + $0x30] sm:$0xff] 0.0
          %302 = vst [vmem:[#allocation2 + $0x38] sm:$0xff] 0.0
          %303 = vst [vmem:[#allocation2 + $0x40] sm:$0xff] 0.0
          %304 = vst [vmem:[#allocation2 + $0x48] sm:$0xff] 0.0
          %305 = vst [vmem:[#allocation2 + $0x50] sm:$0xff] 0.0
          %306 = vst [vmem:[#allocation2 + $0x58] sm:$0xff] 0.0
          %307 = vst [vmem:[#allocation2 + $0x60] sm:$0xff] 0.0
          %308 = vst [vmem:[#allocation2 + $0x68] sm:$0xff] 0.0
          %309 = vst [vmem:[#allocation2 + $0x70] sm:$0xff] 0.0
          %310 = vst [vmem:[#allocation2 + $0x78] sm:$0xff] 0.0
        $region40: #{tpu_custom_call.1} parent=27 // pred_fallthru
          _
        %v311 = vld [vmem:[#allocation2] sm:$0xff]
        %v312 = vld [vmem:[#allocation2 + $0x8] sm:$0xff]
        %v313 = vld [vmem:[#allocation2 + $0x10] sm:$0xff]
        %v314 = vld [vmem:[#allocation2 + $0x18] sm:$0xff]
        %v315 = vld [vmem:[#allocation2 + $0x20] sm:$0xff]
        %v316 = vld [vmem:[#allocation2 + $0x28] sm:$0xff]
        %v317 = vld [vmem:[#allocation2 + $0x30] sm:$0xff]
        %v318 = vld [vmem:[#allocation2 + $0x38] sm:$0xff]
        %v319 = vld [vmem:[#allocation2 + $0x40] sm:$0xff]
        %v320 = vld [vmem:[#allocation2 + $0x48] sm:$0xff]
        %v321 = vld [vmem:[#allocation2 + $0x50] sm:$0xff]
        %v322 = vld [vmem:[#allocation2 + $0x58] sm:$0xff]
        %v323 = vld [vmem:[#allocation2 + $0x60] sm:$0xff]
        %v324 = vld [vmem:[#allocation2 + $0x68] sm:$0xff]
        %v325 = vld [vmem:[#allocation2 + $0x70] sm:$0xff]
        %v326 = vld [vmem:[#allocation2 + $0x78] sm:$0xff]
        %v327 = vld [vmem:[%s249] sm:$0xff]
        %v328 = vld [vmem:[%s249 + $0x8] sm:$0xff]
        %v329 = vld [vmem:[%s249 + $0x10] sm:$0xff]
        %v330 = vld [vmem:[%s249 + $0x18] sm:$0xff]
        %v331 = vld [vmem:[%s249 + $0x20] sm:$0xff]
        %v332 = vld [vmem:[%s249 + $0x28] sm:$0xff]
        %v333 = vld [vmem:[%s249 + $0x30] sm:$0xff]
        %v334 = vld [vmem:[%s249 + $0x38] sm:$0xff]
        %v335 = vld [vmem:[%s249 + $0x40] sm:$0xff]
        %v336 = vld [vmem:[%s249 + $0x48] sm:$0xff]
        %v337 = vld [vmem:[%s249 + $0x50] sm:$0xff]
        %v338 = vld [vmem:[%s249 + $0x58] sm:$0xff]
        %v339 = vld [vmem:[%s249 + $0x60] sm:$0xff]
        %v340 = vld [vmem:[%s249 + $0x68] sm:$0xff]
        %v341 = vld [vmem:[%s249 + $0x70] sm:$0xff]
        %v342 = vld [vmem:[%s249 + $0x78] sm:$0xff]
        %v343 = vld [vmem:[#allocation6] sm:$0xff]
        %v344 = vld [vmem:[#allocation6 + $0x8] sm:$0xff]
        %v345 = vld [vmem:[#allocation6 + $0x10] sm:$0xff]
        %v346 = vld [vmem:[#allocation6 + $0x18] sm:$0xff]
        %v347 = vld [vmem:[#allocation6 + $0x20] sm:$0xff]
        %v348 = vld [vmem:[#allocation6 + $0x28] sm:$0xff]
        %v349 = vld [vmem:[#allocation6 + $0x30] sm:$0xff]
        %v350 = vld [vmem:[#allocation6 + $0x38] sm:$0xff]
        %v351 = vld [vmem:[#allocation6 + $0x40] sm:$0xff]
        %v352 = vld [vmem:[#allocation6 + $0x48] sm:$0xff]
        %v353 = vld [vmem:[#allocation6 + $0x50] sm:$0xff]
        %v354 = vld [vmem:[#allocation6 + $0x58] sm:$0xff]
        %v355 = vld [vmem:[#allocation6 + $0x60] sm:$0xff]
        %v356 = vld [vmem:[#allocation6 + $0x68] sm:$0xff]
        %v357 = vld [vmem:[#allocation6 + $0x70] sm:$0xff]
        %v358 = vld [vmem:[#allocation6 + $0x78] sm:$0xff]
        %359 = vmatprep.subr.mxu0 0.0
        %360 = vmatpush1.msra.mxu0 %v343
        %361 = vmatprep.subr.mxu0 0.0
        %362 = vmatpush1.msra.mxu0 %v344
        %363 = vmatprep.subr.mxu0 0.0
        %364 = vmatpush1.msra.mxu0 %v345
        %365 = vmatprep.subr.mxu0 0.0
        %366 = vmatpush1.msra.mxu0 %v346
        %367 = vmatprep.subr.mxu0 0.0
        %368 = vmatpush1.msra.mxu0 %v347
        %369 = vmatprep.subr.mxu0 0.0
        %370 = vmatpush1.msra.mxu0 %v348
        %371 = vmatprep.subr.mxu0 0.0
        %372 = vmatpush1.msra.mxu0 %v349
        %373 = vmatprep.subr.mxu0 0.0
        %374 = vmatpush1.msra.mxu0 %v350
        %375 = vmatprep.subr.mxu0 0.0
        %376 = vmatpush1.msra.mxu0 %v351
        %377 = vmatprep.subr.mxu0 0.0
        %378 = vmatpush1.msra.mxu0 %v352
        %379 = vmatprep.subr.mxu0 0.0
        %380 = vmatpush1.msra.mxu0 %v353
        %381 = vmatprep.subr.mxu0 0.0
        %382 = vmatpush1.msra.mxu0 %v354
        %383 = vmatprep.subr.mxu0 0.0
        %384 = vmatpush1.msra.mxu0 %v355
        %385 = vmatprep.subr.mxu0 0.0
        %386 = vmatpush1.msra.mxu0 %v356
        %387 = vmatprep.subr.mxu0 0.0
        %388 = vmatpush1.msra.mxu0 %v357
        %389 = vmatprep.subr.mxu0 0.0
        %390 = vmatpush1.msra.mxu0 %v358
        %391 = vmatprep.subr.mxu0 0.0
        %392 = vmatpush1.msra.mxu0 0.0
        %393 = vmatprep.subr.mxu0 0.0
        %394 = vmatpush1.msra.mxu0 0.0
        %395 = vmatprep.subr.mxu0 0.0
        %396 = vmatpush1.msra.mxu0 0.0
        %397 = vmatprep.subr.mxu0 0.0
        %398 = vmatpush1.msra.mxu0 0.0
        %399 = vmatprep.subr.mxu0 0.0
        %400 = vmatpush1.msra.mxu0 0.0
        %401 = vmatprep.subr.mxu0 0.0
        %402 = vmatpush1.msra.mxu0 0.0
        %403 = vmatprep.subr.mxu0 0.0
        %404 = vmatpush1.msra.mxu0 0.0
        %405 = vmatprep.subr.mxu0 0.0
        %406 = vmatpush1.msra.mxu0 0.0
        %407 = vmatprep.subr.mxu0 0.0
        %408 = vmatpush1.msra.mxu0 0.0
        %409 = vmatprep.subr.mxu0 0.0
        %410 = vmatpush1.msra.mxu0 0.0
        %411 = vmatprep.subr.mxu0 0.0
        %412 = vmatpush1.msra.mxu0 0.0
        %413 = vmatprep.subr.mxu0 0.0
        %414 = vmatpush1.msra.mxu0 0.0
        %415 = vmatprep.subr.mxu0 0.0
        %416 = vmatpush1.msra.mxu0 0.0
        %417 = vmatprep.subr.mxu0 0.0
        %418 = vmatpush1.msra.mxu0 0.0
        %419 = vmatprep.subr.mxu0 0.0
        %420 = vmatpush1.msra.mxu0 0.0
        %421 = vmatprep.subr.mxu0 0.0
        %422 = vmatpush1.msra.mxu0 0.0
        %423 = vmatprep.mubr.f32.mxu0 0.0
        %424 = vmatmul.mubr.f32.gmra.mrb[0].mxu0 %v327
        %v425 = vpop.f32.mrb[0].mxu0
        %v426 = vadd.f32 0.0, %v425
        %v427 = vpop.f32.mrb[0].mxu0
        %428 = vmatprep.mubr.f32.mxu0 0.0
        %429 = vmatmul.mubr.f32.gmra.mrb[0].mxu0 %v328
        %v430 = vpop.f32.mrb[0].mxu0
        %v431 = vadd.f32 0.0, %v430
        %v432 = vpop.f32.mrb[0].mxu0
        %433 = vmatprep.mubr.f32.mxu0 0.0
        %434 = vmatmul.mubr.f32.gmra.mrb[0].mxu0 %v329
        %v435 = vpop.f32.mrb[0].mxu0
        %v436 = vadd.f32 0.0, %v435
        %v437 = vpop.f32.mrb[0].mxu0
        %438 = vmatprep.mubr.f32.mxu0 0.0
        %439 = vmatmul.mubr.f32.gmra.mrb[0].mxu0 %v330
        %v440 = vpop.f32.mrb[0].mxu0
        %v441 = vadd.f32 0.0, %v440
        %v442 = vpop.f32.mrb[0].mxu0
        %443 = vmatprep.mubr.f32.mxu0 0.0
        %444 = vmatmul.mubr.f32.gmra.mrb[0].mxu0 %v331
        %v445 = vpop.f32.mrb[0].mxu0
        %v446 = vadd.f32 0.0, %v445
        %v447 = vpop.f32.mrb[0].mxu0
        %448 = vmatprep.mubr.f32.mxu0 0.0
        %449 = vmatmul.mubr.f32.gmra.mrb[0].mxu0 %v332
        %v450 = vpop.f32.mrb[0].mxu0
        %v451 = vadd.f32 0.0, %v450
        %v452 = vpop.f32.mrb[0].mxu0
        %453 = vmatprep.mubr.f32.mxu0 0.0
        %454 = vmatmul.mubr.f32.gmra.mrb[0].mxu0 %v333
        %v455 = vpop.f32.mrb[0].mxu0
        %v456 = vadd.f32 0.0, %v455
        %v457 = vpop.f32.mrb[0].mxu0
        %458 = vmatprep.mubr.f32.mxu0 0.0
        %459 = vmatmul.mubr.f32.gmra.mrb[0].mxu0 %v334
        %v460 = vpop.f32.mrb[0].mxu0
        %v461 = vadd.f32 0.0, %v460
        %v462 = vpop.f32.mrb[0].mxu0
        %463 = vmatprep.mubr.f32.mxu0 0.0
        %464 = vmatmul.mubr.f32.gmra.mrb[0].mxu0 %v335
        %v465 = vpop.f32.mrb[0].mxu0
        %v466 = vadd.f32 0.0, %v465
        %v467 = vpop.f32.mrb[0].mxu0
        %468 = vmatprep.mubr.f32.mxu0 0.0
        %469 = vmatmul.mubr.f32.gmra.mrb[0].mxu0 %v336
        %v470 = vpop.f32.mrb[0].mxu0
        %v471 = vadd.f32 0.0, %v470
        %v472 = vpop.f32.mrb[0].mxu0
        %473 = vmatprep.mubr.f32.mxu0 0.0
        %474 = vmatmul.mubr.f32.gmra.mrb[0].mxu0 %v337
        %v475 = vpop.f32.mrb[0].mxu0
        %v476 = vadd.f32 0.0, %v475
        %v477 = vpop.f32.mrb[0].mxu0
        %478 = vmatprep.mubr.f32.mxu0 0.0
        %479 = vmatmul.mubr.f32.gmra.mrb[0].mxu0 %v338
        %v480 = vpop.f32.mrb[0].mxu0
        %v481 = vadd.f32 0.0, %v480
        %v482 = vpop.f32.mrb[0].mxu0
        %483 = vmatprep.mubr.f32.mxu0 0.0
        %484 = vmatmul.mubr.f32.gmra.mrb[0].mxu0 %v339
        %v485 = vpop.f32.mrb[0].mxu0
        %v486 = vadd.f32 0.0, %v485
        %v487 = vpop.f32.mrb[0].mxu0
        %488 = vmatprep.mubr.f32.mxu0 0.0
        %489 = vmatmul.mubr.f32.gmra.mrb[0].mxu0 %v340
        %v490 = vpop.f32.mrb[0].mxu0
        %v491 = vadd.f32 0.0, %v490
        %v492 = vpop.f32.mrb[0].mxu0
        %493 = vmatprep.mubr.f32.mxu0 0.0
        %494 = vmatmul.mubr.f32.gmra.mrb[0].mxu0 %v341
        %v495 = vpop.f32.mrb[0].mxu0
        %v496 = vadd.f32 0.0, %v495
        %v497 = vpop.f32.mrb[0].mxu0
        %498 = vmatprep.mubr.f32.mxu0 0.0
        %499 = vmatmul.mubr.f32.gmra.mrb[0].mxu0 %v342
        %v500 = vpop.f32.mrb[0].mxu0
        %v501 = vadd.f32 0.0, %v500
        %v502 = vpop.f32.mrb[0].mxu0
        %503 = vdwg.mxu0
        %v504 = vadd.f32 %v311, %v426
        %v505 = vadd.f32 %v312, %v431
        %v506 = vadd.f32 %v313, %v436
        %v507 = vadd.f32 %v314, %v441
        %v508 = vadd.f32 %v315, %v446
        %v509 = vadd.f32 %v316, %v451
        %v510 = vadd.f32 %v317, %v456
        %v511 = vadd.f32 %v318, %v461
        %v512 = vadd.f32 %v319, %v466
        %v513 = vadd.f32 %v320, %v471
        %v514 = vadd.f32 %v321, %v476
        %v515 = vadd.f32 %v322, %v481
        %v516 = vadd.f32 %v323, %v486
        %v517 = vadd.f32 %v324, %v491
        %v518 = vadd.f32 %v325, %v496
        %v519 = vadd.f32 %v326, %v501
        %520 = vst [vmem:[#allocation2] sm:$0xff] %v504
        %521 = vst [vmem:[#allocation2 + $0x8] sm:$0xff] %v505
        %522 = vst [vmem:[#allocation2 + $0x10] sm:$0xff] %v506
        %523 = vst [vmem:[#allocation2 + $0x18] sm:$0xff] %v507
        %524 = vst [vmem:[#allocation2 + $0x20] sm:$0xff] %v508
        %525 = vst [vmem:[#allocation2 + $0x28] sm:$0xff] %v509
        %526 = vst [vmem:[#allocation2 + $0x30] sm:$0xff] %v510
        %527 = vst [vmem:[#allocation2 + $0x38] sm:$0xff] %v511
        %528 = vst [vmem:[#allocation2 + $0x40] sm:$0xff] %v512
        %529 = vst [vmem:[#allocation2 + $0x48] sm:$0xff] %v513
        %530 = vst [vmem:[#allocation2 + $0x50] sm:$0xff] %v514
        %531 = vst [vmem:[#allocation2 + $0x58] sm:$0xff] %v515
        %532 = vst [vmem:[#allocation2 + $0x60] sm:$0xff] %v516
        %533 = vst [vmem:[#allocation2 + $0x68] sm:$0xff] %v517
        %534 = vst [vmem:[#allocation2 + $0x70] sm:$0xff] %v518
        %535 = vst [vmem:[#allocation2 + $0x78] sm:$0xff] %v519
        // Predicated region
        $region41: #{tpu_custom_call.1} parent=27 // pred_check
          %p536 = pneg %p291
        $region42: #{tpu_custom_call.1} parent=27 // pred_check_branch
          %538 = sbr.rel (%p536) target = $region44
        $region43: #{tpu_custom_call.1} parent=27 // pred_region
          %v539 = vld [vmem:[#allocation2] sm:$0xff]
          %v540 = vld [vmem:[#allocation2 + $0x8] sm:$0xff]
          %v541 = vld [vmem:[#allocation2 + $0x10] sm:$0xff]
          %v542 = vld [vmem:[#allocation2 + $0x18] sm:$0xff]
          %v543 = vld [vmem:[#allocation2 + $0x20] sm:$0xff]
          %v544 = vld [vmem:[#allocation2 + $0x28] sm:$0xff]
          %v545 = vld [vmem:[#allocation2 + $0x30] sm:$0xff]
          %v546 = vld [vmem:[#allocation2 + $0x38] sm:$0xff]
          %v547 = vld [vmem:[#allocation2 + $0x40] sm:$0xff]
          %v548 = vld [vmem:[#allocation2 + $0x48] sm:$0xff]
          %v549 = vld [vmem:[#allocation2 + $0x50] sm:$0xff]
          %v550 = vld [vmem:[#allocation2 + $0x58] sm:$0xff]
          %v551 = vld [vmem:[#allocation2 + $0x60] sm:$0xff]
          %v552 = vld [vmem:[#allocation2 + $0x68] sm:$0xff]
          %v553 = vld [vmem:[#allocation2 + $0x70] sm:$0xff]
          %v554 = vld [vmem:[#allocation2 + $0x78] sm:$0xff]
          %555 = vst [vmem:[%s273] sm:$0xff] %v539
          %556 = vst [vmem:[%s273 + $0x8] sm:$0xff] %v540
          %557 = vst [vmem:[%s273 + $0x10] sm:$0xff] %v541
          %558 = vst [vmem:[%s273 + $0x18] sm:$0xff] %v542
          %559 = vst [vmem:[%s273 + $0x20] sm:$0xff] %v543
          %560 = vst [vmem:[%s273 + $0x28] sm:$0xff] %v544
          %561 = vst [vmem:[%s273 + $0x30] sm:$0xff] %v545
          %562 = vst [vmem:[%s273 + $0x38] sm:$0xff] %v546
          %563 = vst [vmem:[%s273 + $0x40] sm:$0xff] %v547
          %564 = vst [vmem:[%s273 + $0x48] sm:$0xff] %v548
          %565 = vst [vmem:[%s273 + $0x50] sm:$0xff] %v549
          %566 = vst [vmem:[%s273 + $0x58] sm:$0xff] %v550
          %567 = vst [vmem:[%s273 + $0x60] sm:$0xff] %v551
          %568 = vst [vmem:[%s273 + $0x68] sm:$0xff] %v552
          %569 = vst [vmem:[%s273 + $0x70] sm:$0xff] %v553
          %570 = vst [vmem:[%s273 + $0x78] sm:$0xff] %v554
          %v571 = vadd.f32 %v539, %v540
          %v572 = vadd.f32 %v571, %v541
          %v573 = vadd.f32 %v572, %v542
          %v574 = vadd.f32 %v573, %v543
          %v575 = vadd.f32 %v574, %v544
          %v576 = vadd.f32 %v575, %v545
          %v577 = vadd.f32 %v576, %v546
          %v578 = vadd.f32 %v577, %v547
          %v579 = vadd.f32 %v578, %v548
          %v580 = vadd.f32 %v579, %v549
          %v581 = vadd.f32 %v580, %v550
          %v582 = vadd.f32 %v581, %v551
          %v583 = vadd.f32 %v582, %v552
          %v584 = vadd.f32 %v583, %v553
          %v585 = vadd.f32 %v584, %v554
          %v586 = vrot.slane %v585, 4
          %v587 = vadd.f32 %v585, %v586
          %v588 = vrot.slane %v587, 2
          %v589 = vadd.f32 %v587, %v588
          %v590 = vrot.slane %v589, 1
          %v591 = vadd.f32 %v589, %v590
          %v592 = vmul.f32 %v539, %v539
          %v593 = vmul.f32 %v540, %v540
          %v594 = vmul.f32 %v541, %v541
          %v595 = vmul.f32 %v542, %v542
          %v596 = vmul.f32 %v543, %v543
          %v597 = vmul.f32 %v544, %v544
          %v598 = vmul.f32 %v545, %v545
          %v599 = vmul.f32 %v546, %v546
          %v600 = vmul.f32 %v547, %v547
          %v601 = vmul.f32 %v548, %v548
          %v602 = vmul.f32 %v549, %v549
          %v603 = vmul.f32 %v550, %v550
          %v604 = vmul.f32 %v551, %v551
          %v605 = vmul.f32 %v552, %v552
          %v606 = vmul.f32 %v553, %v553
          %v607 = vmul.f32 %v554, %v554
          %v608 = vadd.f32 %v592, %v593
          %v609 = vadd.f32 %v608, %v594
          %v610 = vadd.f32 %v609, %v595
          %v611 = vadd.f32 %v610, %v596
          %v612 = vadd.f32 %v611, %v597
          %v613 = vadd.f32 %v612, %v598
          %v614 = vadd.f32 %v613, %v599
          %v615 = vadd.f32 %v614, %v600
          %v616 = vadd.f32 %v615, %v601
          %v617 = vadd.f32 %v616, %v602
          %v618 = vadd.f32 %v617, %v603
          %v619 = vadd.f32 %v618, %v604
          %v620 = vadd.f32 %v619, %v605
          %v621 = vadd.f32 %v620, %v606
          %v622 = vadd.f32 %v621, %v607
          %v623 = vrot.slane %v622, 4
          %v624 = vadd.f32 %v622, %v623
          %v625 = vrot.slane %v624, 2
          %v626 = vadd.f32 %v624, %v625
          %v627 = vrot.slane %v626, 1
          %v628 = vadd.f32 %v626, %v627
          %629 = vst [vmem:[%s280] sm:$0xff] %v591
          %630 = vst [vmem:[%s287] sm:$0xff] %v628
        $region44: #{tpu_custom_call.1} parent=27 // pred_fallthru
          _
        %s631 = sand.u32 %s111, 1
        %s632 = scalar_lea.sflag [#allocation5], %s631
        %s633 = sand.u32 %s111, 1
        %s634 = smul.addr %s633, 128
        %s635 = scalar_lea.vmem [#allocation8], %s634
        %s636 = sand.u32 %s26, 1
        %s637 = scalar_lea.sflag [#allocation10], %s636
        %s638 = sand.u32 %s139, 1
        %s639 = smul.addr %s638, 8
        %s640 = scalar_lea.vmem [#allocation9], %s639
        %s641 = sand.u32 %s26, 1
        %s642 = scalar_lea.sflag [#allocation10], %s641
        %s643 = sand.u32 %s167, 1
        %s644 = smul.addr %s643, 8
        %s645 = scalar_lea.vmem [#allocation11], %s644
        // Predicated region
        $region45: #{tpu_custom_call.1} parent=27 // pred_check
          %p646 = pneg %p121
        $region46: #{tpu_custom_call.1} parent=27 // pred_check_branch
          %648 = sbr.rel (%p646) target = $region48
        $region47: #{tpu_custom_call.1} parent=27 // pred_region
          %s649 = smul.u32 16, %s31
          %s651 = ssub.s32 2048, 2048
          %652 = vsyncadd %s632, %s651
          %s653 = sadd.s32 %s32, %s649
          %s654 = smul.addr %s653, 128
          %s655 = scalar_lea.hbm %s2, %s654
          %s656 = sshll.u32 %s635, 4
          %s657 = int_to_ptr.vmem [resolvable:$true] %s656
          %662 = dma.vmem_to_hbm [thread:$0]  %s657, 2048, %s655, %s632, 128, 128, 8
        $region48: #{tpu_custom_call.1} parent=27 // pred_fallthru
          _
        // Predicated region
        $region49: #{tpu_custom_call.1} parent=27 // pred_check
          %p663 = pneg %p149
        $region50: #{tpu_custom_call.1} parent=27 // pred_check_branch
          %665 = sbr.rel (%p663) target = $region52
        $region51: #{tpu_custom_call.1} parent=27 // pred_region
          %s667 = ssub.s32 128, 128
          %668 = vsyncadd %s637, %s667
          %s669 = sadd.s32 %s32, %s31
          %s670 = smul.addr %s669, 128
          %s671 = scalar_lea.hbm %s3, %s670
          %s673 = sshll.u32 %s640, 4
          %s674 = int_to_ptr.vmem [resolvable:$true] %s673
          %676 = dma.vmem_to_hbm [thread:$0]  %s674, 128, %s671, %s637
        $region52: #{tpu_custom_call.1} parent=27 // pred_fallthru
          _
        // Predicated region
        $region53: #{tpu_custom_call.1} parent=27 // pred_check
          %p677 = pneg %p177
        $region54: #{tpu_custom_call.1} parent=27 // pred_check_branch
          %679 = sbr.rel (%p677) target = $region56
        $region55: #{tpu_custom_call.1} parent=27 // pred_region
          %s681 = ssub.s32 128, 128
          %682 = vsyncadd %s642, %s681
          %s683 = sadd.s32 %s32, %s31
          %s684 = smul.addr %s683, 128
          %s685 = scalar_lea.hbm %s4, %s684
          %s687 = sshll.u32 %s645, 4
          %s688 = int_to_ptr.vmem [resolvable:$true] %s687
          %690 = dma.vmem_to_hbm [thread:$0]  %s688, 128, %s685, %s642
        $region56: #{tpu_custom_call.1} parent=27 // pred_fallthru
          _
      $region28: #{tpu_custom_call.1} parent=5 // pred_fallthru
        _
      %p691 = scmp.le.s32.totalorder 2, %s21
      // Predicated region
      $region57: #{tpu_custom_call.1} parent=5 // pred_check
        %p692 = pneg %p691
      $region58: #{tpu_custom_call.1} parent=5 // pred_check_branch
        %694 = sbr.rel (%p692) target = $region60
      $region59: #{tpu_custom_call.1} parent=5 // pred_region
        %s695 = ssub.s32 %s21, 2
        // Predicated region
        $region61: #{tpu_custom_call.1} parent=59 // pred_check
          %p696 = pneg %p127
        $region62: #{tpu_custom_call.1} parent=59 // pred_check_branch
          %698 = sbr.rel (%p696) target = $region64
        $region63: #{tpu_custom_call.1} parent=59 // pred_region
          %s699 = sand.u32 %s112, 1
          %s700 = scalar_lea.sflag [#allocation5], %s699
          %s701 = sand.u32 %s112, 1
          %s702 = smul.addr %s701, 128
          %s703 = scalar_lea.vmem [#allocation8], %s702
          %704 = dma.done %s700, 2048
        $region64: #{tpu_custom_call.1} parent=59 // pred_fallthru
          _
        // Predicated region
        $region65: #{tpu_custom_call.1} parent=59 // pred_check
          %p705 = pneg %p155
        $region66: #{tpu_custom_call.1} parent=59 // pred_check_branch
          %707 = sbr.rel (%p705) target = $region68
        $region67: #{tpu_custom_call.1} parent=59 // pred_region
          %s708 = sand.u32 %s27, 1
          %s709 = scalar_lea.sflag [#allocation10], %s708
          %s710 = sand.u32 %s140, 1
          %s711 = smul.addr %s710, 8
          %s712 = scalar_lea.vmem [#allocation9], %s711
          %713 = dma.done %s709, 128
        $region68: #{tpu_custom_call.1} parent=59 // pred_fallthru
          _
        // Predicated region
        $region69: #{tpu_custom_call.1} parent=59 // pred_check
          %p714 = pneg %p183
        $region70: #{tpu_custom_call.1} parent=59 // pred_check_branch
          %716 = sbr.rel (%p714) target = $region72
        $region71: #{tpu_custom_call.1} parent=59 // pred_region
          %s717 = sand.u32 %s27, 1
          %s718 = scalar_lea.sflag [#allocation10], %s717
          %s719 = sand.u32 %s168, 1
          %s720 = smul.addr %s719, 8
          %s721 = scalar_lea.vmem [#allocation11], %s720
          %722 = dma.done %s718, 128
        $region72: #{tpu_custom_call.1} parent=59 // pred_fallthru
          _
      $region60: #{tpu_custom_call.1} parent=5 // pred_fallthru
        _
    $region6: #{tpu_custom_call.1} parent=1 // loop_footer
      %s25 = sadd.s32 1, %s21
    $region7: #{tpu_custom_call.1} parent=1 // loop_footer_branch
      %20 = sbr.rel target = $region3
    $region8: #{tpu_custom_call.1} parent=1 // loop_exit
      _
    %723 = vsyncpa [#allocation4], 1
    %s724 = scalar_lea.sflag [#allocation4], 1
    %725 = vsyncpa %s724, 1
    %726 = vsyncpa [#allocation7], 1
    %727 = vsyncpa [#allocation5], 1
    %s728 = scalar_lea.sflag [#allocation5], 1
    %729 = vsyncpa %s728, 1
    %730 = vsyncpa [#allocation10], 1
    %s731 = scalar_lea.sflag [#allocation10], 1
    %732 = vsyncpa %s731, 1

</llo_original>
